<compile_context>
chip_gen: v7x
topology: tpu7x:2x2x1
jax: 0.10.0
libtpu: 0.0.40
codegen_flags: <defaults>
</compile_context>

<pallas_src>
import functools

import jax
import jax.numpy as jnp
from jax.experimental import pallas as pl
from jax.experimental.pallas import tpu as pltpu

IN_FEATURES = 64
HIDDEN = 32
OUT_FEATURES = 10
MAX_BATCH_TILE = 2048   # f32 per-tile: ~512 KiB x-in + ~80 KiB out (x2 buffers) -> tiny


def _round_up(n, m):
    return ((n + m - 1) // m) * m


def mlp_kernel(x_ref, w1_ref, b1_ref, w2_ref, b2_ref, o_ref):
    # Layer 1: h = relu(x @ W1 + b1)   (f32 operands, f32 MXU accumulation)
    h = jnp.dot(x_ref[...], w1_ref[...], preferred_element_type=jnp.float32)
    h = jnp.maximum(h + b1_ref[...], 0.0)
    # Layer 2: o = h @ W2 + b2 -> stored straight to the narrow (tb, 10) HBM-facing block.
    o = jnp.dot(h, w2_ref[...], preferred_element_type=jnp.float32)
    o_ref[...] = (o + b2_ref[...]).astype(o_ref.dtype)


@functools.partial(jax.jit, static_argnames=("block_batch",))
def mnist_server_forward(x, w1, b1, w2, b2, *, block_batch=MAX_BATCH_TILE):
    """x: [B, 64] -> [B, 10] float32.  w1: [64, 32], b1: [32], w2: [32, 10], b2: [10]."""
    B = x.shape[0]

    x_f = x.astype(jnp.float32)
    w1_f = w1.astype(jnp.float32)
    w2_f = w2.astype(jnp.float32)
    b1_f = b1.reshape(1, HIDDEN).astype(jnp.float32)
    b2_f = b2.reshape(1, OUT_FEATURES).astype(jnp.float32)

    # Batch tile: multiple of 8 (sublane), >= 2 grid blocks when B allows (v7x megacore),
    # capped so per-tile VMEM stays small on every generation.
    tb = min(block_batch, max(8, _round_up(pl.cdiv(B, 2), 8)))
    n_blocks = pl.cdiv(B, tb)   # non-dividing tail block is masked by Pallas

    out = pl.pallas_call(
        mlp_kernel,
        out_shape=jax.ShapeDtypeStruct((B, OUT_FEATURES), jnp.float32),
        grid_spec=pltpu.PrefetchScalarGridSpec(
            num_scalar_prefetch=0,
            grid=(n_blocks,),
            in_specs=[
                pl.BlockSpec((tb, IN_FEATURES), lambda i: (i, 0)),        # batch-tiled x
                pl.BlockSpec((IN_FEATURES, HIDDEN), lambda i: (0, 0)),    # grid-invariant
                pl.BlockSpec((1, HIDDEN), lambda i: (0, 0)),              # grid-invariant
                pl.BlockSpec((HIDDEN, OUT_FEATURES), lambda i: (0, 0)),   # grid-invariant
                pl.BlockSpec((1, OUT_FEATURES), lambda i: (0, 0)),        # grid-invariant
            ],
            out_specs=pl.BlockSpec((tb, OUT_FEATURES), lambda i: (i, 0)),  # narrow HBM write
        ),
        compiler_params=pltpu.CompilerParams(
            dimension_semantics=("parallel",),   # shard batch tiles across TCs (v7x)
        ),
    )(x_f, w1_f, b1_f, w2_f, b2_f)

    return out


def init_params(key):
    """Deterministic init mirroring nn.Linear shapes: (64->32), (32->10)."""
    k1, k2, k3, k4 = jax.random.split(key, 4)
    lim1 = 1.0 / jnp.sqrt(64.0)
    lim2 = 1.0 / jnp.sqrt(32.0)
    w1 = jax.random.uniform(k1, (IN_FEATURES, HIDDEN), jnp.float32, -lim1, lim1)
    b1 = jax.random.uniform(k2, (HIDDEN,), jnp.float32, -lim1, lim1)
    w2 = jax.random.uniform(k3, (HIDDEN, OUT_FEATURES), jnp.float32, -lim2, lim2)
    b2 = jax.random.uniform(k4, (OUT_FEATURES,), jnp.float32, -lim2, lim2)
    return w1, b1, w2, b2


if __name__ == "__main__":
    key = jax.random.PRNGKey(0)
    k_x, k_p = jax.random.split(key)
    w1, b1, w2, b2 = init_params(k_p)

    # Small shapes consistent with the module; 12 and 24 exercise the masked tail-block path
    # and the multi-block ("parallel") grid path.
    for batch in (8, 12, 24):
        x = jax.random.normal(jax.random.fold_in(k_x, batch), (batch, IN_FEATURES),
                              jnp.float32)
        out = mnist_server_forward(x, w1, b1, w2, b2)
        jax.block_until_ready(out)

        # Pure-JAX f32 reference (same math as the PyTorch module).
        ref = jnp.maximum(x @ w1 + b1[None, :], 0.0) @ w2 + b2[None, :]
        assert out.shape == (batch, OUT_FEATURES)
        # Loose tolerance to cover MXU default-precision passes in both kernel and reference.
        assert jnp.allclose(out, ref, atol=5e-2, rtol=5e-2), "mismatch vs reference"

    print("KERNEL_OK")
</pallas_src>

<mosaic_0001>
module attributes {stable_mosaic.version = 11 : i64} {
  func.func @mlp_kernel(%arg0: i32, %arg1: memref<8x64xf32, #tpu.memory_space<vmem>>, %arg2: memref<64x32xf32, #tpu.memory_space<vmem>>, %arg3: memref<1x32xf32, #tpu.memory_space<vmem>>, %arg4: memref<32x10xf32, #tpu.memory_space<vmem>>, %arg5: memref<1x10xf32, #tpu.memory_space<vmem>>, %arg6: memref<8x10xf32, #tpu.memory_space<vmem>>) attributes {dimension_semantics = [#tpu.dimension_semantics<parallel>], iteration_bounds = array<i64: 1>, scalar_prefetch = 0 : i64, scratch_operands = 0 : i64, tpu.core_type = #tpu.core_type<tc>, window_params = [{transform_indices = @transform_0, window_bounds = array<i64: 8, 64>}, {pipeline_mode = #tpu.pipeline_mode<synchronous>, transform_indices = @transform_1, window_bounds = array<i64: 64, 32>}, {pipeline_mode = #tpu.pipeline_mode<synchronous>, transform_indices = @transform_2, window_bounds = array<i64: 1, 32>}, {pipeline_mode = #tpu.pipeline_mode<synchronous>, transform_indices = @transform_3, window_bounds = array<i64: 32, 10>}, {pipeline_mode = #tpu.pipeline_mode<synchronous>, transform_indices = @transform_4, window_bounds = array<i64: 1, 10>}, {transform_indices = @transform_5, window_bounds = array<i64: 8, 10>}]} {
    %c0 = arith.constant 0 : index
    %c0_0 = arith.constant 0 : index
    %0 = vector.load %arg1[%c0, %c0_0] : memref<8x64xf32, #tpu.memory_space<vmem>>, vector<8x64xf32>
    %c0_1 = arith.constant 0 : index
    %c0_2 = arith.constant 0 : index
    %1 = vector.load %arg2[%c0_1, %c0_2] : memref<64x32xf32, #tpu.memory_space<vmem>>, vector<64x32xf32>
    %cst = arith.constant dense<0.000000e+00> : vector<8x32xf32>
    %2 = tpu.matmul %0, %1, %cst {dimension_numbers = #tpu.dot_dimension_numbers<[1], [0], [0], [1], [0, 0, 1, 1], [], []>} : vector<8x64xf32>, vector<64x32xf32>, vector<8x32xf32> -> vector<8x32xf32>
    %c0_3 = arith.constant 0 : index
    %c0_4 = arith.constant 0 : index
    %3 = vector.load %arg3[%c0_3, %c0_4] : memref<1x32xf32, #tpu.memory_space<vmem>>, vector<1x32xf32>
    %4 = vector.broadcast %3 : vector<1x32xf32> to vector<8x32xf32>
    %5 = arith.addf %2, %4 : vector<8x32xf32>
    %cst_5 = arith.constant 0.000000e+00 : f32
    %6 = vector.broadcast %cst_5 : f32 to vector<8x32xf32>
    %7 = arith.maximumf %5, %6 : vector<8x32xf32>
    %c0_6 = arith.constant 0 : index
    %c0_7 = arith.constant 0 : index
    %8 = vector.load %arg4[%c0_6, %c0_7] : memref<32x10xf32, #tpu.memory_space<vmem>>, vector<32x10xf32>
    %cst_8 = arith.constant dense<0.000000e+00> : vector<8x10xf32>
    %9 = tpu.matmul %7, %8, %cst_8 {dimension_numbers = #tpu.dot_dimension_numbers<[1], [0], [0], [1], [0, 0, 1, 1], [], []>} : vector<8x32xf32>, vector<32x10xf32>, vector<8x10xf32> -> vector<8x10xf32>
    %c0_9 = arith.constant 0 : index
    %c0_10 = arith.constant 0 : index
    %10 = vector.load %arg5[%c0_9, %c0_10] : memref<1x10xf32, #tpu.memory_space<vmem>>, vector<1x10xf32>
    %11 = vector.broadcast %10 : vector<1x10xf32> to vector<8x10xf32>
    %12 = arith.addf %9, %11 : vector<8x10xf32>
    %c0_11 = arith.constant 0 : index
    %c0_12 = arith.constant 0 : index
    %13 = vector.load %arg6[%c0_11, %c0_12] : memref<8x10xf32, #tpu.memory_space<vmem>>, vector<8x10xf32>
    tpu.vector_store %arg6[%c0_11, %c0_12], %12 {strides = array<i32>} : memref<8x10xf32, #tpu.memory_space<vmem>>, vector<8x10xf32>,
    return
  }
  func.func @transform_0(%arg0: i32) -> (i32, i32) {
    %c0_i32 = arith.constant 0 : i32
    %c0_i32_0 = arith.constant 0 : i32
    return %arg0, %c0_i32 : i32, i32
  }
  func.func @transform_1(%arg0: i32) -> (i32, i32) {
    %c0_i32 = arith.constant 0 : i32
    %c0_i32_0 = arith.constant 0 : i32
    %c0_i32_1 = arith.constant 0 : i32
    return %c0_i32, %c0_i32_0 : i32, i32
  }
  func.func @transform_2(%arg0: i32) -> (i32, i32) {
    %c0_i32 = arith.constant 0 : i32
    %c0_i32_0 = arith.constant 0 : i32
    %c0_i32_1 = arith.constant 0 : i32
    return %c0_i32, %c0_i32_0 : i32, i32
  }
  func.func @transform_3(%arg0: i32) -> (i32, i32) {
    %c0_i32 = arith.constant 0 : i32
    %c0_i32_0 = arith.constant 0 : i32
    %c0_i32_1 = arith.constant 0 : i32
    return %c0_i32, %c0_i32_0 : i32, i32
  }
  func.func @transform_4(%arg0: i32) -> (i32, i32) {
    %c0_i32 = arith.constant 0 : i32
    %c0_i32_0 = arith.constant 0 : i32
    %c0_i32_1 = arith.constant 0 : i32
    return %c0_i32, %c0_i32_0 : i32, i32
  }
  func.func @transform_5(%arg0: i32) -> (i32, i32) {
    %c0_i32 = arith.constant 0 : i32
    %c0_i32_0 = arith.constant 0 : i32
    return %arg0, %c0_i32 : i32, i32
  }
}

</mosaic_0001>

<llo_original>
// kernel: mnist_server_forward.1
$region0: #{mnist_server_forward.1}
  #allocation0 [shape = 'u32[]', space=smem, size = 0x4, offset = 0x4, fixed_abs, tag = 'smem constant byte address 0x4 - core index']
  #allocation1 [shape = 'u32[144,128]{1,0:T(1,128)}', space=vmem, size = 0x12000, scoped, tag = 'internal scratch']
  %s0 = inlined_call_operand.vmem [shape: f32[8,64], index: 0, kind: input, shape index: {}]
  %s1 = inlined_call_operand.vmem [shape: f32[64,32], index: 1, kind: input, shape index: {}]
  %s2 = inlined_call_operand.vmem [shape: f32[1,32], index: 2, kind: input, shape index: {}]
  %s3 = inlined_call_operand.vmem [shape: f32[32,10], index: 3, kind: input, shape index: {}]
  %s4 = inlined_call_operand.vmem [shape: f32[1,10], index: 4, kind: input, shape index: {}]
  %s5 = inlined_call_operand.hbm [shape: f32[8,10], index: 5, kind: output, shape index: {}]
  %s6 = sld [smem:[#allocation0]]
  $region30: #{mnist_server_forward.1} parent=0
    _
  %s8 = ssub.s32 1, %s6
  %s9 = scalar_select 0, %s8, %s6
  $region1: #{mnist_server_forward.1} parent=0
    #allocation2 [shape = 'u8[4096]{0}', space=vmem, size = 0x1000, scoped, tag = 'output window, operand 0, single buffered']
    #allocation3 [shape = 's32[1]{0}', space=sflag, size = 0x4, scoped, tag = 'scoped memory for mnist_server_forward.1']
    %10 = vsyncpa [#allocation3], 0
    // Predicated region
    $region2: #{mnist_server_forward.1} parent=1 // pred_check
      _
    $region3: #{mnist_server_forward.1} parent=1 // pred_check_branch
      %12 = sbr.rel (0) target = $region5
    $region4: #{mnist_server_forward.1} parent=1 // pred_region
      _
    $region5: #{mnist_server_forward.1} parent=1 // pred_fallthru
      _
    // Predicated region
    $region6: #{mnist_server_forward.1} parent=1 // pred_check
      _
    $region7: #{mnist_server_forward.1} parent=1 // pred_check_branch
      %14 = sbr.rel (0) target = $region9
    $region8: #{mnist_server_forward.1} parent=1 // pred_region
      _
    $region9: #{mnist_server_forward.1} parent=1 // pred_fallthru
      _
    // Predicated region
    $region10: #{mnist_server_forward.1} parent=1 // pred_check
      _
    $region11: #{mnist_server_forward.1} parent=1 // pred_check_branch
      %16 = sbr.rel (0) target = $region13
    $region12: #{mnist_server_forward.1} parent=1 // pred_region
      _
    $region13: #{mnist_server_forward.1} parent=1 // pred_fallthru
      _
    // Predicated region
    $region14: #{mnist_server_forward.1} parent=1 // pred_check
      _
    $region15: #{mnist_server_forward.1} parent=1 // pred_check_branch
      %18 = sbr.rel (0) target = $region17
    $region16: #{mnist_server_forward.1} parent=1 // pred_region
      _
    $region17: #{mnist_server_forward.1} parent=1 // pred_fallthru
      _
    // Predicated region
    $region18: #{mnist_server_forward.1} parent=1 // pred_check
      _
    $region19: #{mnist_server_forward.1} parent=1 // pred_check_branch
      %20 = sbr.rel (0) target = $region21
    $region20: #{mnist_server_forward.1} parent=1 // pred_region
      _
    $region21: #{mnist_server_forward.1} parent=1 // pred_fallthru
      _
    %v21 = vld [vmem:[%s0] sm:$0xff]
    %v22 = vld [vmem:[%s1] sm:$0xff]
    %v23 = vld [vmem:[%s1 + $0x8] sm:$0xff]
    %v24 = vld [vmem:[%s1 + $0x10] sm:$0xff]
    %v25 = vld [vmem:[%s1 + $0x18] sm:$0xff]
    %v26 = vld [vmem:[%s1 + $0x20] sm:$0xff]
    %v27 = vld [vmem:[%s1 + $0x28] sm:$0xff]
    %v28 = vld [vmem:[%s1 + $0x30] sm:$0xff]
    %v29 = vld [vmem:[%s1 + $0x38] sm:$0xff]
    %v30 = vld [vmem:[%s2] sm:$0x1]
    %v32 = vlaneseq
    %v33 = vshrl.u32 %v32, 7
    %v34 = vsub.s32 0, %v33
    %v35 = vrot.slane %v30, %v34
    %vm37 = vcmask 523264
    %v39 = vsel %vm37, %v21, 0
    %41 = vmatprep.subr.mxu0 0.0
    %42 = vmatpush1.msra.mxu0 %v22
    %43 = vmatprep.subr.mxu0 0.0
    %44 = vmatpush1.msra.mxu0 %v23
    %45 = vmatprep.subr.mxu0 0.0
    %46 = vmatpush1.msra.mxu0 %v24
    %47 = vmatprep.subr.mxu0 0.0
    %48 = vmatpush1.msra.mxu0 %v25
    %49 = vmatprep.subr.mxu0 0.0
    %50 = vmatpush1.msra.mxu0 %v26
    %51 = vmatprep.subr.mxu0 0.0
    %52 = vmatpush1.msra.mxu0 %v27
    %53 = vmatprep.subr.mxu0 0.0
    %54 = vmatpush1.msra.mxu0 %v28
    %55 = vmatprep.subr.mxu0 0.0
    %56 = vmatpush1.msra.mxu0 %v29
    %57 = vmatprep.subr.mxu0 0.0
    %58 = vmatpush1.msra.mxu0 0.0
    %59 = vmatprep.subr.mxu0 0.0
    %60 = vmatpush1.msra.mxu0 0.0
    %61 = vmatprep.subr.mxu0 0.0
    %62 = vmatpush1.msra.mxu0 0.0
    %63 = vmatprep.subr.mxu0 0.0
    %64 = vmatpush1.msra.mxu0 0.0
    %65 = vmatprep.subr.mxu0 0.0
    %66 = vmatpush1.msra.mxu0 0.0
    %67 = vmatprep.subr.mxu0 0.0
    %68 = vmatpush1.msra.mxu0 0.0
    %69 = vmatprep.subr.mxu0 0.0
    %70 = vmatpush1.msra.mxu0 0.0
    %71 = vmatprep.subr.mxu0 0.0
    %72 = vmatpush1.msra.mxu0 0.0
    %73 = vmatprep.subr.mxu0 0.0
    %74 = vmatpush1.msra.mxu0 0.0
    %75 = vmatprep.subr.mxu0 0.0
    %76 = vmatpush1.msra.mxu0 0.0
    %77 = vmatprep.subr.mxu0 0.0
    %78 = vmatpush1.msra.mxu0 0.0
    %79 = vmatprep.subr.mxu0 0.0
    %80 = vmatpush1.msra.mxu0 0.0
    %81 = vmatprep.subr.mxu0 0.0
    %82 = vmatpush1.msra.mxu0 0.0
    %83 = vmatprep.subr.mxu0 0.0
    %84 = vmatpush1.msra.mxu0 0.0
    %85 = vmatprep.subr.mxu0 0.0
    %86 = vmatpush1.msra.mxu0 0.0
    %87 = vmatprep.subr.mxu0 0.0
    %88 = vmatpush1.msra.mxu0 0.0
    %89 = vmatprep.subr.mxu0 0.0
    %90 = vmatpush1.msra.mxu0 0.0
    %91 = vmatprep.subr.mxu0 0.0
    %92 = vmatpush1.msra.mxu0 0.0
    %93 = vmatprep.subr.mxu0 0.0
    %94 = vmatpush1.msra.mxu0 0.0
    %95 = vmatprep.subr.mxu0 0.0
    %96 = vmatpush1.msra.mxu0 0.0
    %97 = vmatprep.subr.mxu0 0.0
    %98 = vmatpush1.msra.mxu0 0.0
    %99 = vmatprep.subr.mxu0 0.0
    %100 = vmatpush1.msra.mxu0 0.0
    %101 = vmatprep.subr.mxu0 0.0
    %102 = vmatpush1.msra.mxu0 0.0
    %103 = vmatprep.subr.mxu0 0.0
    %104 = vmatpush1.msra.mxu0 0.0
    %105 = vmatprep.mubr.f32.mxu0 0.0
    %106 = vmatmul.mubr.f32.gmra.mrb[0].mxu0 %v39
    %v107 = vpop.f32.mrb[0].mxu0
    %v108 = vadd.f32 %v35, %v107
    %v109 = vpop.f32.mrb[0].mxu0
    %110 = vdwg.mxu0
    %v111 = vmax.f32 %v108, 0.0
    %v112 = vld [vmem:[%s3] sm:$0xff]
    %v113 = vld [vmem:[%s3 + $0x8] sm:$0xff]
    %v114 = vld [vmem:[%s3 + $0x10] sm:$0xff]
    %v115 = vld [vmem:[%s3 + $0x18] sm:$0xff]
    %v116 = vld [vmem:[%s4] sm:$0x1]
    %v118 = vlaneseq
    %v119 = vshrl.u32 %v118, 7
    %v120 = vsub.s32 0, %v119
    %v121 = vrot.slane %v116, %v120
    %vm123 = vcmask 261120
    %v125 = vsel %vm123, %v111, 0
    %127 = vmatprep.subr.mxu0 0.0
    %128 = vmatpush1.msra.mxu0 %v112
    %129 = vmatprep.subr.mxu0 0.0
    %130 = vmatpush1.msra.mxu0 %v113
    %131 = vmatprep.subr.mxu0 0.0
    %132 = vmatpush1.msra.mxu0 %v114
    %133 = vmatprep.subr.mxu0 0.0
    %134 = vmatpush1.msra.mxu0 %v115
    %135 = vmatprep.subr.mxu0 0.0
    %136 = vmatpush1.msra.mxu0 0.0
    %137 = vmatprep.subr.mxu0 0.0
    %138 = vmatpush1.msra.mxu0 0.0
    %139 = vmatprep.subr.mxu0 0.0
    %140 = vmatpush1.msra.mxu0 0.0
    %141 = vmatprep.subr.mxu0 0.0
    %142 = vmatpush1.msra.mxu0 0.0
    %143 = vmatprep.subr.mxu0 0.0
    %144 = vmatpush1.msra.mxu0 0.0
    %145 = vmatprep.subr.mxu0 0.0
    %146 = vmatpush1.msra.mxu0 0.0
    %147 = vmatprep.subr.mxu0 0.0
    %148 = vmatpush1.msra.mxu0 0.0
    %149 = vmatprep.subr.mxu0 0.0
    %150 = vmatpush1.msra.mxu0 0.0
    %151 = vmatprep.subr.mxu0 0.0
    %152 = vmatpush1.msra.mxu0 0.0
    %153 = vmatprep.subr.mxu0 0.0
    %154 = vmatpush1.msra.mxu0 0.0
    %155 = vmatprep.subr.mxu0 0.0
    %156 = vmatpush1.msra.mxu0 0.0
    %157 = vmatprep.subr.mxu0 0.0
    %158 = vmatpush1.msra.mxu0 0.0
    %159 = vmatprep.subr.mxu0 0.0
    %160 = vmatpush1.msra.mxu0 0.0
    %161 = vmatprep.subr.mxu0 0.0
    %162 = vmatpush1.msra.mxu0 0.0
    %163 = vmatprep.subr.mxu0 0.0
    %164 = vmatpush1.msra.mxu0 0.0
    %165 = vmatprep.subr.mxu0 0.0
    %166 = vmatpush1.msra.mxu0 0.0
    %167 = vmatprep.subr.mxu0 0.0
    %168 = vmatpush1.msra.mxu0 0.0
    %169 = vmatprep.subr.mxu0 0.0
    %170 = vmatpush1.msra.mxu0 0.0
    %171 = vmatprep.subr.mxu0 0.0
    %172 = vmatpush1.msra.mxu0 0.0
    %173 = vmatprep.subr.mxu0 0.0
    %174 = vmatpush1.msra.mxu0 0.0
    %175 = vmatprep.subr.mxu0 0.0
    %176 = vmatpush1.msra.mxu0 0.0
    %177 = vmatprep.subr.mxu0 0.0
    %178 = vmatpush1.msra.mxu0 0.0
    %179 = vmatprep.subr.mxu0 0.0
    %180 = vmatpush1.msra.mxu0 0.0
    %181 = vmatprep.subr.mxu0 0.0
    %182 = vmatpush1.msra.mxu0 0.0
    %183 = vmatprep.subr.mxu0 0.0
    %184 = vmatpush1.msra.mxu0 0.0
    %185 = vmatprep.subr.mxu0 0.0
    %186 = vmatpush1.msra.mxu0 0.0
    %187 = vmatprep.subr.mxu0 0.0
    %188 = vmatpush1.msra.mxu0 0.0
    %189 = vmatprep.subr.mxu0 0.0
    %190 = vmatpush1.msra.mxu0 0.0
    %191 = vmatprep.mubr.f32.mxu0 0.0
    %192 = vmatmul.mubr.f32.gmra.mrb[0].mxu0 %v125
    %v193 = vpop.f32.mrb[0].mxu0
    %v194 = vadd.f32 %v121, %v193
    %v195 = vpop.f32.mrb[0].mxu0
    %196 = vdwg.mxu0
    %vm197 = vcmask 80896
    %198 = vst.msk [vmem:[#allocation2] sm:$0xff] %vm197, %v194
    // Predicated region
    $region22: #{mnist_server_forward.1} parent=1 // pred_check
      _
    $region23: #{mnist_server_forward.1} parent=1 // pred_check_branch
      %200 = sbr.rel (0) target = $region25
    $region24: #{mnist_server_forward.1} parent=1 // pred_region
      %s202 = ssub.s32 128, 128
      %203 = vsyncadd [#allocation3], %s202
      %s205 = sshll.u32 [#allocation2], 4
      %s206 = int_to_ptr.vmem [resolvable:$true] %s205
      %208 = dma.vmem_to_hbm [thread:$0]  %s206, 128, %s5, [#allocation3]
    $region25: #{mnist_server_forward.1} parent=1 // pred_fallthru
      _
    // Predicated region
    $region26: #{mnist_server_forward.1} parent=1 // pred_check
      _
    $region27: #{mnist_server_forward.1} parent=1 // pred_check_branch
      %210 = sbr.rel (0) target = $region29
    $region28: #{mnist_server_forward.1} parent=1 // pred_region
      %211 = dma.done [#allocation3], 128
    $region29: #{mnist_server_forward.1} parent=1 // pred_fallthru
      _
    %212 = vsyncpa [#allocation3], 1

</llo_original>
